<compile_context>
chip_gen: v5e
topology: v5e:2x2
jax: 0.10.0
libtpu: 0.0.40
codegen_flags: <defaults>
</compile_context>

<pallas_src>
import jax
import jax.numpy as jnp
from jax import lax
from jax.experimental import pallas as pl
from jax.experimental.pallas import tpu as pltpu


def _nnnode_kernel(x_ref, w_ref, b_ref, o_ref):
    # x_ref: (TB, F) VMEM   w_ref: (1, F) VMEM   b_ref: (1, 1) SMEM
    # o_ref: (1, 1, TB) VMEM  (lane-dense row of outputs for this batch tile)
    x = x_ref[...]                      # (TB, F)
    w = w_ref[...]                      # (1, F)
    b = b_ref[0, 0]                     # scalar read from SMEM

    # w (1,F) . x (TB,F) contracted over the feature dim -> (1, TB).
    # Avoids an explicit w.T transpose and yields a lane-dense result.
    acc = lax.dot_general(
        w, x,
        dimension_numbers=(((1,), (1,)), ((), ())),
        preferred_element_type=jnp.float32,
    )                                   # (1, TB)
    o_ref[...] = jnp.maximum(acc + b, 0.0)[None].astype(o_ref.dtype)


def _cdiv(a, b):
    return -(-a // b)


def _pick_block_rows(batch, n_features, *,
                     target_tile_bytes=4 * 1024 * 1024, max_rows=4096):
    """Rows per batch tile.

    ~4 MiB of f32 per tile, multiple of 128 (unmasked lane-dense output
    stores), then rebalanced across tiles so batch padding stays small.
    """
    if batch <= 128:
        return batch                    # single full-batch tile (always legal)
    rows = target_tile_bytes // max(1, n_features * 4)
    rows = max(128, min(max_rows, rows))
    rows = (rows // 128) * 128
    rows = min(rows, _cdiv(batch, 128) * 128)
    # Rebalance: same tile count, but evenly sized tiles -> less tail padding.
    n_tiles = _cdiv(batch, rows)
    rows = _cdiv(_cdiv(batch, n_tiles), 128) * 128
    return rows


def nnnode_forward(x, weight, bias, *, block_rows=None):
    """ReLU(x @ weight.T + bias).

    x: (B, F) float32, weight: (1, F) float32, bias: scalar float32.
    Returns (B, 1) float32, matching torch.nn.Linear(F, 1) + ReLU.
    """
    x = jnp.asarray(x, jnp.float32)
    weight = jnp.asarray(weight, jnp.float32).reshape(1, -1)
    b_arr = jnp.asarray(bias, jnp.float32).reshape(1, 1)

    B, F = x.shape
    if block_rows is None:
        TB = _pick_block_rows(B, F)
    else:
        TB = max(1, int(block_rows))
    if B <= TB:
        TB = B                          # single full-batch tile (always legal)

    num_tiles = _cdiv(B, TB)
    Bp = num_tiles * TB
    if Bp != B:
        # Zero-pad the batch so every tile is full; padded rows dropped below.
        x = jnp.pad(x, ((0, Bp - B), (0, 0)))

    out = pl.pallas_call(
        _nnnode_kernel,
        out_shape=jax.ShapeDtypeStruct((num_tiles, 1, TB), jnp.float32),
        grid=(num_tiles,),
        in_specs=[
            # x: batch-tiled -> double-buffered DMA overlaps compute.
            pl.BlockSpec((TB, F), lambda i: (i, 0)),
            # weight: invariant index_map -> fetched once, stays resident.
            pl.BlockSpec((1, F), lambda i: (0, 0)),
            # bias: scalar in SMEM (no VMEM DMA / vector broadcast load).
            pl.BlockSpec(memory_space=pltpu.MemorySpace.SMEM),
        ],
        out_specs=pl.BlockSpec((1, 1, TB), lambda i: (i, 0, 0)),
        compiler_params=pltpu.CompilerParams(
            # Batch tiles are independent -> shard across TensorCores on v7x.
            dimension_semantics=("parallel",),
        ),
    )(x, weight, b_arr)

    # Lane-dense (num_tiles, 1, TB) slab -> PyTorch-shaped (B, 1).
    return out.reshape(Bp, 1)[:B]


if __name__ == "__main__":
    key = jax.random.PRNGKey(0)
    k_x, k_w, k_b = jax.random.split(key, 3)

    B = 8   # batch of input vectors
    F = 8   # number of incoming links (in_features of the Linear)

    # Deterministic synthetic "links" weights and bias (as NNNode.__init__ would set).
    x = jax.random.normal(k_x, (B, F), dtype=jnp.float32)
    weight = jax.random.normal(k_w, (1, F), dtype=jnp.float32)   # link weights
    bias = jax.random.normal(k_b, (), dtype=jnp.float32)         # node bias

    out = jax.block_until_ready(nnnode_forward(x, weight, bias))
    ref = jnp.maximum(x @ weight.T + bias, 0.0)
    assert out.shape == (B, 1)
    assert jnp.allclose(out, ref, atol=1e-5, rtol=1e-5)

    # Also exercise the multi-tile (pipelined + padded) path at a small size.
    B2, F2 = 40, 16
    k_x2, k_w2, k_b2 = jax.random.split(jax.random.PRNGKey(1), 3)
    x2 = jax.random.normal(k_x2, (B2, F2), dtype=jnp.float32)
    w2 = jax.random.normal(k_w2, (1, F2), dtype=jnp.float32)
    b2 = jax.random.normal(k_b2, (), dtype=jnp.float32)
    out2 = jax.block_until_ready(nnnode_forward(x2, w2, b2, block_rows=16))
    ref2 = jnp.maximum(x2 @ w2.T + b2, 0.0)
    assert out2.shape == (B2, 1)
    assert jnp.allclose(out2, ref2, atol=1e-5, rtol=1e-5)

    # Larger batch: exercises the auto-sized (128-multiple) tile path.
    B3, F3 = 1000, 24
    k_x3, k_w3, k_b3 = jax.random.split(jax.random.PRNGKey(2), 3)
    x3 = jax.random.normal(k_x3, (B3, F3), dtype=jnp.float32)
    w3 = jax.random.normal(k_w3, (1, F3), dtype=jnp.float32)
    b3 = jax.random.normal(k_b3, (), dtype=jnp.float32)
    out3 = jax.block_until_ready(nnnode_forward(x3, w3, b3))
    ref3 = jnp.maximum(x3 @ w3.T + b3, 0.0)
    assert out3.shape == (B3, 1)
    assert jnp.allclose(out3, ref3, atol=1e-5, rtol=1e-5)

    print("KERNEL_OK")
</pallas_src>

<mosaic_0001>
module attributes {stable_mosaic.version = 11 : i64} {
  func.func @_nnnode_kernel(%arg0: i32, %arg1: memref<8x8xf32, #tpu.memory_space<vmem>>, %arg2: memref<1x8xf32, #tpu.memory_space<vmem>>, %arg3: memref<1x1xf32, #tpu.memory_space<smem>>, %arg4: memref<1x1x8xf32, #tpu.memory_space<vmem>>) attributes {dimension_semantics = [#tpu.dimension_semantics<parallel>], iteration_bounds = array<i64: 1>, scalar_prefetch = 0 : i64, scratch_operands = 0 : i64, tpu.core_type = #tpu.core_type<tc>, window_params = [{transform_indices = @transform_0, window_bounds = array<i64: 8, 8>}, {pipeline_mode = #tpu.pipeline_mode<synchronous>, transform_indices = @transform_1, window_bounds = array<i64: 1, 8>}, {transform_indices = @transform_2, window_bounds = array<i64: 1, 1>}, {transform_indices = @transform_3, window_bounds = array<i64: 1, 1, 8>}]} {
    %c0 = arith.constant 0 : index
    %c0_0 = arith.constant 0 : index
    %0 = vector.load %arg1[%c0, %c0_0] : memref<8x8xf32, #tpu.memory_space<vmem>>, vector<8x8xf32>
    %c0_1 = arith.constant 0 : index
    %c0_2 = arith.constant 0 : index
    %1 = vector.load %arg2[%c0_1, %c0_2] : memref<1x8xf32, #tpu.memory_space<vmem>>, vector<1x8xf32>
    %c0_3 = arith.constant 0 : index
    %c0_4 = arith.constant 0 : index
    %2 = memref.load %arg3[%c0_3, %c0_4] : memref<1x1xf32, #tpu.memory_space<smem>>
    %cst = arith.constant dense<0.000000e+00> : vector<1x8xf32>
    %3 = tpu.matmul %1, %0, %cst {dimension_numbers = #tpu.dot_dimension_numbers<[1], [1], [0], [0], [0, 0, 1, 0], [], []>} : vector<1x8xf32>, vector<8x8xf32>, vector<1x8xf32> -> vector<1x8xf32>
    %4 = vector.broadcast %2 : f32 to vector<1x8xf32>
    %5 = arith.addf %3, %4 : vector<1x8xf32>
    %cst_5 = arith.constant 0.000000e+00 : f32
    %6 = vector.broadcast %cst_5 : f32 to vector<1x8xf32>
    %7 = arith.maximumf %5, %6 : vector<1x8xf32>
    %8 = vector.shape_cast %7 : vector<1x8xf32> to vector<1x1x8xf32>
    %c0_6 = arith.constant 0 : index
    %c0_7 = arith.constant 0 : index
    %c0_8 = arith.constant 0 : index
    %9 = vector.load %arg4[%c0_6, %c0_7, %c0_8] : memref<1x1x8xf32, #tpu.memory_space<vmem>>, vector<1x1x8xf32>
    tpu.vector_store %arg4[%c0_6, %c0_7, %c0_8], %8 {strides = array<i32>} : memref<1x1x8xf32, #tpu.memory_space<vmem>>, vector<1x1x8xf32>,
    return
  }
  func.func @transform_0(%arg0: i32) -> (i32, i32) {
    %c0_i32 = arith.constant 0 : i32
    %c0_i32_0 = arith.constant 0 : i32
    return %arg0, %c0_i32 : i32, i32
  }
  func.func @transform_1(%arg0: i32) -> (i32, i32) {
    %c0_i32 = arith.constant 0 : i32
    %c0_i32_0 = arith.constant 0 : i32
    %c0_i32_1 = arith.constant 0 : i32
    return %c0_i32, %c0_i32_0 : i32, i32
  }
  func.func @transform_2(%arg0: i32) -> (i32, i32) {
    %c0_i32 = arith.constant 0 : i32
    %c0_i32_0 = arith.constant 0 : i32
    %c0_i32_1 = arith.constant 0 : i32
    return %c0_i32, %c0_i32_0 : i32, i32
  }
  func.func @transform_3(%arg0: i32) -> (i32, i32, i32) {
    %c0_i32 = arith.constant 0 : i32
    %c0_i32_0 = arith.constant 0 : i32
    %c0_i32_1 = arith.constant 0 : i32
    return %arg0, %c0_i32, %c0_i32_0 : i32, i32, i32
  }
}

</mosaic_0001>

<llo_original>
// kernel: tpu_custom_call.1
$region0: #{tpu_custom_call.1}
  #allocation0 [shape = 'u32[]', space=smem, size = 0x4, offset = 0x4, fixed_abs, tag = 'smem constant byte address 0x4 - core index']
  #allocation1 [shape = 'u32[72,128]{1,0:T(1,128)}', space=vmem, size = 0x9000, scoped, tag = 'internal scratch']
  #allocation2 [shape = 'f32[1,1]{1,0:T(1,128)S(6)}', space=smem, size = 0x200, scoped, tag = 'scoped memory for tpu_custom_call.1']
  %s0 = inlined_call_operand.hbm [shape: f32[8,8], index: 0, kind: input, shape index: {}]
  %s1 = inlined_call_operand.vmem [shape: f32[1,8], index: 1, kind: input, shape index: {}]
  %s2 = inlined_call_operand.<no memory space> [shape: f32[1,1], index: 2, kind: input, shape index: {}]
  %s3 = inlined_call_operand.hbm [shape: f32[1,1,8], index: 3, kind: output, shape index: {}]
  %s4 = sld [smem:[#allocation0]]
  $region26: #{tpu_custom_call.1} parent=0
    _
  %s6 = ssub.s32 1, %s4
  %s7 = scalar_select 0, %s6, %s4
  %8 = sst [smem:[#allocation2]] %s2
  $region1: #{tpu_custom_call.1} parent=0
    #allocation3 [shape = 'u8[4096]{0}', space=vmem, size = 0x1000, scoped, tag = 'input window, operand 0, single buffered']
    #allocation4 [shape = 's32[1]{0}', space=sflag, size = 0x4, scoped, tag = 'scoped memory for tpu_custom_call.1']
    #allocation5 [shape = 's32[1]{0}', space=sflag, size = 0x4, scoped, tag = 'scoped memory for tpu_custom_call.1']
    #allocation6 [shape = 'u8[512]{0}', space=vmem, size = 0x400, scoped, tag = 'output window, operand 0, single buffered']
    %9 = vsyncpa [#allocation4], 0
    %10 = vsyncpa [#allocation5], 0
    // Predicated region
    $region2: #{tpu_custom_call.1} parent=1 // pred_check
      _
    $region3: #{tpu_custom_call.1} parent=1 // pred_check_branch
      %12 = sbr.rel (0) target = $region5
    $region4: #{tpu_custom_call.1} parent=1 // pred_region
      %14 = vsyncadd [#allocation4], 0
      %s16 = sshll.u32 %s0, 4
      %s17 = int_to_ptr.hbm [resolvable:$true] %s16
      %s18 = sshll.u32 [#allocation3], 4
      %s19 = int_to_ptr.vmem [resolvable:$true] %s18
      %21 = dma.hbm_to_vmem [thread:$0]  %s17, 128, %s19, [#allocation4]
    $region5: #{tpu_custom_call.1} parent=1 // pred_fallthru
      _
    // Predicated region
    $region6: #{tpu_custom_call.1} parent=1 // pred_check
      _
    $region7: #{tpu_custom_call.1} parent=1 // pred_check_branch
      %23 = sbr.rel (0) target = $region9
    $region8: #{tpu_custom_call.1} parent=1 // pred_region
      _
    $region9: #{tpu_custom_call.1} parent=1 // pred_fallthru
      _
    // Predicated region
    $region10: #{tpu_custom_call.1} parent=1 // pred_check
      _
    $region11: #{tpu_custom_call.1} parent=1 // pred_check_branch
      %25 = sbr.rel (0) target = $region13
    $region12: #{tpu_custom_call.1} parent=1 // pred_region
      _
    $region13: #{tpu_custom_call.1} parent=1 // pred_fallthru
      _
    // Predicated region
    $region14: #{tpu_custom_call.1} parent=1 // pred_check
      _
    $region15: #{tpu_custom_call.1} parent=1 // pred_check_branch
      %27 = sbr.rel (0) target = $region17
    $region16: #{tpu_custom_call.1} parent=1 // pred_region
      %29 = dma.done [#allocation4], 128
    $region17: #{tpu_custom_call.1} parent=1 // pred_fallthru
      _
    %v30 = vld [vmem:[#allocation3] sm:$0xff]
    %v31 = vld [vmem:[%s1] sm:$0x1]
    %s32 = sld [smem:[#allocation2]]
    %v33 = vstv %s32
    %vm34 = vcmask 64512
    %v36 = vsel %vm34, %v31, 0
    %v39 = vsel %vm34, %v30, 0
    %41 = vmatpush.xpose.msra.mxu0 0.0
    %42 = vmatpush.xpose.msra.mxu0 0.0
    %43 = vmatpush.xpose.msra.mxu0 0.0
    %44 = vmatpush.xpose.msra.mxu0 0.0
    %45 = vmatpush.xpose.msra.mxu0 0.0
    %46 = vmatpush.xpose.msra.mxu0 0.0
    %47 = vmatpush.xpose.msra.mxu0 0.0
    %48 = vmatpush.xpose.msra.mxu0 0.0
    %49 = vmatpush.xpose.msra.mxu0 0.0
    %50 = vmatpush.xpose.msra.mxu0 0.0
    %51 = vmatpush.xpose.msra.mxu0 0.0
    %52 = vmatpush.xpose.msra.mxu0 0.0
    %53 = vmatpush.xpose.msra.mxu0 0.0
    %54 = vmatpush.xpose.msra.mxu0 0.0
    %55 = vmatpush.xpose.msra.mxu0 0.0
    %56 = vmatpush.xpose.msra.mxu0 %v39
    %57 = vmatmul.f32.gmra.mxu0 %v36
    %v58 = vpop.f32.mrf.mxu0
    %v59 = vadd.f32 %v33, %v58
    %60 = vdwg.mxu0
    %v61 = vmax.f32 %v59, 0.0
    %vm62 = vcmask 57344
    %63 = vst.msk [vmem:[#allocation6] sm:$0x1] %vm62, %v61
    // Predicated region
    $region18: #{tpu_custom_call.1} parent=1 // pred_check
      _
    $region19: #{tpu_custom_call.1} parent=1 // pred_check_branch
      %65 = sbr.rel (0) target = $region21
    $region20: #{tpu_custom_call.1} parent=1 // pred_region
      %67 = vsyncadd [#allocation5], 0
      %s69 = sshll.u32 [#allocation6], 4
      %s70 = int_to_ptr.vmem [resolvable:$true] %s69
      %s71 = sshll.u32 %s3, 4
      %s72 = int_to_ptr.hbm [resolvable:$true] %s71
      %74 = dma.vmem_to_hbm [thread:$0]  %s70, 16, %s72, [#allocation5]
    $region21: #{tpu_custom_call.1} parent=1 // pred_fallthru
      _
    // Predicated region
    $region22: #{tpu_custom_call.1} parent=1 // pred_check
      _
    $region23: #{tpu_custom_call.1} parent=1 // pred_check_branch
      %76 = sbr.rel (0) target = $region25
    $region24: #{tpu_custom_call.1} parent=1 // pred_region
      %78 = dma.done [#allocation5], 16
    $region25: #{tpu_custom_call.1} parent=1 // pred_fallthru
      _
    %79 = vsyncpa [#allocation4], 1
    %80 = vsyncpa [#allocation5], 1

</llo_original>
